<compile_context>
chip_gen: v5e
topology: v5e:2x2
jax: 0.10.0
libtpu: 0.0.40
codegen_flags: <defaults>
</compile_context>

<pallas_src>
import math
import functools
import jax
import jax.numpy as jnp
from jax.experimental import pallas as pl
from jax.experimental.pallas import tpu as pltpu


def _round_up(v, m):
    return (v + m - 1) // m * m


def _vmem_budget_bytes():
    """~75% of physical VMEM (96 MiB on v5e/v6e, 48 MiB on v7x); safe fallback."""
    cap = 64 << 20
    try:
        info = pltpu.get_tpu_info()
        cap = int(getattr(info, "vmem_capacity_bytes", cap))
    except Exception:
        pass
    return (cap * 3) // 4


def _pad_cast(a, shape, dtype):
    """Zero-pad + cast, skipping the copy entirely when nothing changes."""
    if tuple(a.shape) == tuple(shape):
        return a if a.dtype == dtype else a.astype(dtype)
    buf = jnp.zeros(shape, dtype)
    return buf.at[tuple(slice(0, s) for s in a.shape)].set(a.astype(dtype))


# ---------------------------------------------------------------------------
# Pass 1: fused support computation   supports = x @ [W1^T | W2^T] + [b1 | b2]
# ---------------------------------------------------------------------------
def _support_kernel(x_ref, w12_ref, b12_ref, s_ref):
    acc = jnp.dot(x_ref[...], w12_ref[...], preferred_element_type=jnp.float32)
    s_ref[...] = (acc + b12_ref[...]).astype(s_ref.dtype)


# ---------------------------------------------------------------------------
# Pass 2: aggregation   out = adj @ s2 + s1   (K-tiled reduction over adj cols)
# The f32 output block is resident across the reduction axis and doubles as
# the accumulator (no scratch, no final copy).
# ---------------------------------------------------------------------------
def _aggregate_kernel(adj_ref, s2_ref, s1_ref, out_ref):
    k = pl.program_id(1)

    @pl.when(k == 0)
    def _():
        out_ref[...] = jnp.zeros_like(out_ref)

    out_ref[...] += jnp.dot(adj_ref[...], s2_ref[...],
                            preferred_element_type=jnp.float32)

    @pl.when(k == pl.num_programs(1) - 1)
    def _():
        out_ref[...] += s1_ref[...].astype(jnp.float32)


@functools.partial(jax.jit, static_argnames=("row_tile", "compute_dtype"))
def new_convolution(x, adj, w1, b1, w2, b2, *, row_tile=512, compute_dtype=None):
    """GraphSage NewConvolution forward.

    x:   (N, F_in)
    adj: (N, N)
    w1, w2: (F_out, F_in)   (PyTorch nn.Linear weight layout)
    b1, b2: (F_out,)
    returns (N, F_out) in x.dtype

    compute_dtype: dtype of the matmul operands.  Default bfloat16 (fast path:
    f32 MXU accumulation, f32 bias/output).  Pass jnp.float32 for a bit-tight
    match of the f32 reference.
    """
    n, f_in = x.shape
    f_out = w1.shape[0]
    assert w1.shape == (f_out, f_in) and w2.shape == (f_out, f_in)
    assert adj.shape == (n, n)
    out_dtype = x.dtype
    if compute_dtype is None:
        compute_dtype = jnp.bfloat16
    compute_dtype = jnp.dtype(compute_dtype)
    cb = compute_dtype.itemsize
    sub = {4: 8, 2: 16, 1: 32}.get(cb, 8)        # sublane packing for rows

    # Lane-dense feature dim (unmasked vector stores).
    fp = _round_up(f_out, 128)
    two_fp = 2 * fp

    budget = _vmem_budget_bytes()

    # Pass-2 working set for a square node tile t (all buffers double-buffered).
    def _ws2(t):
        return (2 * t * t * cb            # adj strip
                + 2 * t * fp * cb         # s2 column slab
                + 2 * t * fp * cb         # s1 column slab
                + 2 * t * fp * 4)         # f32 output / accumulator

    def _fits(t):
        return _ws2(t) <= (budget * 9) // 10

    # ---- Node padding / tile choice (no round-up to the tile size) ----
    np_small = _round_up(n, sub)
    if np_small <= row_tile and _fits(np_small):
        np_ = np_small                    # single full-extent node tile
        tm = np_
    else:
        np_ = _round_up(n, 128)           # pad N only to 128, NOT to the tile
        tm, t = 128, 128
        while t <= min(row_tile, np_):
            if np_ % t == 0 and _fits(t):
                tm = t
            t += 128
    tk = tm
    n_rt = np_ // tm

    # Host-side padded copies only when actually needed; padded adj COLUMNS are
    # zero so the (biased) padded rows of support_2 contribute nothing, and
    # padded output rows/cols are sliced away at the end.
    x_p = _pad_cast(x, (np_, f_in), compute_dtype)
    adj_p = _pad_cast(adj, (np_, np_), compute_dtype)

    # Fused weight / bias slabs: columns [0, fp) -> W1/b1, [fp, 2fp) -> W2/b2.
    w12 = jnp.zeros((f_in, two_fp), compute_dtype)
    w12 = w12.at[:, :f_out].set(w1.T.astype(compute_dtype))
    w12 = w12.at[:, fp:fp + f_out].set(w2.T.astype(compute_dtype))
    b12 = jnp.zeros((1, two_fp), jnp.float32)
    b12 = b12.at[0, :f_out].set(b1.astype(jnp.float32))
    b12 = b12.at[0, fp:fp + f_out].set(b2.astype(jnp.float32))

    # ---------------- Pass 1: supports (computed once) ----------------
    # Fused-feature tile: whole slab when it fits, otherwise the largest
    # 128-multiple divisor of 2*fp whose double-buffered weight tile stays
    # within ~1/4 of the VMEM budget (guards large layers on v7x's 64 MiB).
    # TODO(synk): for very large F_in an additional reduction grid axis over
    # F_in would be needed; unnecessary at these layer sizes.
    w_cap = budget // 4
    tf, t = 128, 128
    while t <= two_fp:
        if two_fp % t == 0 and 2 * f_in * t * cb <= w_cap:
            tf = t
        t += 128
    n_ft = two_fp // tf

    ws1 = (2 * tm * f_in * cb            # x tile
           + 2 * f_in * tf * cb          # weight tile (resident per j)
           + 2 * tf * 4                  # bias tile
           + 2 * tm * tf * cb)           # supports output tile
    vmem1 = int(min(budget, max(32 << 20, 2 * ws1)))

    supports = pl.pallas_call(
        _support_kernel,
        out_shape=jax.ShapeDtypeStruct((np_, two_fp), compute_dtype),
        grid_spec=pltpu.PrefetchScalarGridSpec(
            num_scalar_prefetch=0,
            # Feature axis outermost so the weight tile stays VMEM-resident
            # across the inner row sweep.
            grid=(n_ft, n_rt),
            in_specs=[
                pl.BlockSpec((tm, f_in), lambda j, i: (i, 0)),
                pl.BlockSpec((f_in, tf), lambda j, i: (0, j)),
                pl.BlockSpec((1, tf), lambda j, i: (0, j)),
            ],
            out_specs=pl.BlockSpec((tm, tf), lambda j, i: (i, j)),
        ),
        compiler_params=pltpu.CompilerParams(
            dimension_semantics=("parallel", "parallel"),
            vmem_limit_bytes=vmem1),
    )(x_p, w12, b12)

    # ---------------- Pass 2: out = adj @ s2 + s1 ----------------
    # Column-block contract used by the index maps below (s1 = block col 0,
    # s2 = block col 1, both of width fp).
    assert supports.shape == (np_, two_fp) and two_fp == 2 * fp

    vmem2 = int(min(budget, max(32 << 20, 2 * _ws2(tm))))

    out_p = pl.pallas_call(
        _aggregate_kernel,
        out_shape=jax.ShapeDtypeStruct((np_, fp), jnp.float32),
        grid_spec=pltpu.PrefetchScalarGridSpec(
            num_scalar_prefetch=0,
            grid=(n_rt, np_ // tk),
            in_specs=[
                pl.BlockSpec((tm, tk), lambda i, k: (i, k)),   # adj strip
                pl.BlockSpec((tk, fp), lambda i, k: (k, 1)),   # s2 = cols [fp, 2fp)
                pl.BlockSpec((tm, fp), lambda i, k: (i, 0)),   # s1 = cols [0, fp)
            ],
            out_specs=pl.BlockSpec((tm, fp), lambda i, k: (i, 0)),
        ),
        compiler_params=pltpu.CompilerParams(
            dimension_semantics=("parallel", "arbitrary"),
            vmem_limit_bytes=vmem2),
    )(adj_p, supports, supports)

    return out_p[:n, :f_out].astype(out_dtype)


def _reference(x, adj, w1, b1, w2, b2):
    support_1 = x @ w1.T + b1
    support_2 = x @ w2.T + b2
    return adj @ support_2 + support_1


if __name__ == "__main__":
    key = jax.random.PRNGKey(0)

    def make_case(key, n, f_in, f_out):
        k_x, k_adj, k_w1, k_b1, k_w2, k_b2 = jax.random.split(key, 6)
        stdv = 1.0 / math.sqrt(f_in)
        w1 = jax.random.uniform(k_w1, (f_out, f_in), jnp.float32, -stdv, stdv)
        w2 = jax.random.uniform(k_w2, (f_out, f_in), jnp.float32, -stdv, stdv)
        b1 = jax.random.uniform(k_b1, (f_out,), jnp.float32, -stdv, stdv)
        b2 = jax.random.uniform(k_b2, (f_out,), jnp.float32, -stdv, stdv)
        x = jax.random.normal(k_x, (n, f_in), jnp.float32)
        adj = jax.random.uniform(k_adj, (n, n), jnp.float32)
        return x, adj, w1, b1, w2, b2

    k1, k2, k3 = jax.random.split(key, 3)

    # 1) Small shape, exact f32 path (single grid point per pass).
    args = make_case(k1, n=16, f_in=32, f_out=32)
    out = jax.block_until_ready(new_convolution(*args, compute_dtype=jnp.float32))
    ref = _reference(*args)
    assert out.shape == (16, 32)
    assert jnp.allclose(out, ref, atol=1e-4, rtol=1e-4), "f32 small-case mismatch"

    # 2) Odd shape, f32 path, small row_tile to force the multi-tile grid
    #    (node padding 300->384, K-reduction accumulation, feature padding).
    args = make_case(k2, n=300, f_in=48, f_out=20)
    out = jax.block_until_ready(
        new_convolution(*args, row_tile=128, compute_dtype=jnp.float32))
    ref = _reference(*args)
    assert out.shape == (300, 20)
    assert jnp.allclose(out, ref, atol=1e-4, rtol=1e-4), "f32 tiled-case mismatch"

    # 3) Default fast path (bf16 operands, f32 accumulation): looser tolerance.
    args = make_case(k3, n=300, f_in=48, f_out=20)
    out = jax.block_until_ready(new_convolution(*args))
    ref = _reference(*args)
    assert out.shape == (300, 20)
    rel_err = jnp.max(jnp.abs(out - ref)) / (jnp.max(jnp.abs(ref)) + 1e-6)
    assert rel_err < 3e-2, f"bf16 path relative error too large: {rel_err}"

    print("KERNEL_OK")
</pallas_src>

<mosaic_0001>
module attributes {stable_mosaic.version = 11 : i64} {
  func.func @_support_kernel(%arg0: i32, %arg1: i32, %arg2: memref<16x32xf32, #tpu.memory_space<vmem>>, %arg3: memref<32x256xf32, #tpu.memory_space<vmem>>, %arg4: memref<1x256xf32, #tpu.memory_space<vmem>>, %arg5: memref<16x256xf32, #tpu.memory_space<vmem>>) attributes {dimension_semantics = [#tpu.dimension_semantics<parallel>, #tpu.dimension_semantics<parallel>], iteration_bounds = array<i64: 1, 1>, scalar_prefetch = 0 : i64, scratch_operands = 0 : i64, tpu.core_type = #tpu.core_type<tc>, window_params = [{transform_indices = @transform_0, window_bounds = array<i64: 16, 32>}, {transform_indices = @transform_1, window_bounds = array<i64: 32, 256>}, {transform_indices = @transform_2, window_bounds = array<i64: 1, 256>}, {transform_indices = @transform_3, window_bounds = array<i64: 16, 256>}]} {
    %c0 = arith.constant 0 : index
    %c0_0 = arith.constant 0 : index
    %0 = vector.load %arg2[%c0, %c0_0] : memref<16x32xf32, #tpu.memory_space<vmem>>, vector<16x32xf32>
    %c0_1 = arith.constant 0 : index
    %c0_2 = arith.constant 0 : index
    %1 = vector.load %arg3[%c0_1, %c0_2] : memref<32x256xf32, #tpu.memory_space<vmem>>, vector<32x256xf32>
    %cst = arith.constant dense<0.000000e+00> : vector<16x256xf32>
    %2 = tpu.matmul %0, %1, %cst {dimension_numbers = #tpu.dot_dimension_numbers<[1], [0], [0], [1], [0, 0, 1, 1], [], []>} : vector<16x32xf32>, vector<32x256xf32>, vector<16x256xf32> -> vector<16x256xf32>
    %c0_3 = arith.constant 0 : index
    %c0_4 = arith.constant 0 : index
    %3 = vector.load %arg4[%c0_3, %c0_4] : memref<1x256xf32, #tpu.memory_space<vmem>>, vector<1x256xf32>
    %4 = vector.broadcast %3 : vector<1x256xf32> to vector<16x256xf32>
    %5 = arith.addf %2, %4 : vector<16x256xf32>
    %c0_5 = arith.constant 0 : index
    %c0_6 = arith.constant 0 : index
    %6 = vector.load %arg5[%c0_5, %c0_6] : memref<16x256xf32, #tpu.memory_space<vmem>>, vector<16x256xf32>
    tpu.vector_store %arg5[%c0_5, %c0_6], %5 {strides = array<i32>} : memref<16x256xf32, #tpu.memory_space<vmem>>, vector<16x256xf32>,
    return
  }
  func.func @transform_0(%arg0: i32, %arg1: i32) -> (i32, i32) {
    %c0_i32 = arith.constant 0 : i32
    %c0_i32_0 = arith.constant 0 : i32
    return %arg1, %c0_i32 : i32, i32
  }
  func.func @transform_1(%arg0: i32, %arg1: i32) -> (i32, i32) {
    %c0_i32 = arith.constant 0 : i32
    %c0_i32_0 = arith.constant 0 : i32
    return %c0_i32, %arg0 : i32, i32
  }
  func.func @transform_2(%arg0: i32, %arg1: i32) -> (i32, i32) {
    %c0_i32 = arith.constant 0 : i32
    %c0_i32_0 = arith.constant 0 : i32
    return %c0_i32, %arg0 : i32, i32
  }
  func.func @transform_3(%arg0: i32, %arg1: i32) -> (i32, i32) {
    %c0_i32 = arith.constant 0 : i32
    return %arg1, %arg0 : i32, i32
  }
}

module attributes {stable_mosaic.version = 11 : i64} {
  func.func @_aggregate_kernel(%arg0: i32, %arg1: i32, %arg2: memref<16x16xf32, #tpu.memory_space<vmem>>, %arg3: memref<16x128xf32, #tpu.memory_space<vmem>>, %arg4: memref<16x128xf32, #tpu.memory_space<vmem>>, %arg5: memref<16x128xf32, #tpu.memory_space<vmem>>) attributes {dimension_semantics = [#tpu.dimension_semantics<parallel>, #tpu.dimension_semantics<arbitrary>], iteration_bounds = array<i64: 1, 1>, scalar_prefetch = 0 : i64, scratch_operands = 0 : i64, tpu.core_type = #tpu.core_type<tc>, window_params = [{transform_indices = @transform_0, window_bounds = array<i64: 16, 16>}, {transform_indices = @transform_1, window_bounds = array<i64: 16, 128>}, {transform_indices = @transform_2, window_bounds = array<i64: 16, 128>}, {transform_indices = @transform_3, window_bounds = array<i64: 16, 128>}]} {
    %c0_i32 = arith.constant 0 : i32
    %0 = arith.cmpi eq, %arg1, %c0_i32 : i32
    %1 = arith.extui %0 : i1 to i32
    %c0_i32_0 = arith.constant 0 : i32
    %2 = arith.cmpi ne, %1, %c0_i32_0 : i32
    scf.if %2 {
      %cst_10 = arith.constant 0.000000e+00 : f32
      %12 = vector.broadcast %cst_10 : f32 to vector<16x128xf32>
      %c0_11 = arith.constant 0 : index
      %c0_12 = arith.constant 0 : index
      %13 = vector.load %arg5[%c0_11, %c0_12] : memref<16x128xf32, #tpu.memory_space<vmem>>, vector<16x128xf32>
      tpu.vector_store %arg5[%c0_11, %c0_12], %12 {strides = array<i32>} : memref<16x128xf32, #tpu.memory_space<vmem>>, vector<16x128xf32>,
    } else {
    }
    %c0 = arith.constant 0 : index
    %c0_1 = arith.constant 0 : index
    %3 = vector.load %arg5[%c0, %c0_1] : memref<16x128xf32, #tpu.memory_space<vmem>>, vector<16x128xf32>
    %c0_2 = arith.constant 0 : index
    %c0_3 = arith.constant 0 : index
    %4 = vector.load %arg2[%c0_2, %c0_3] : memref<16x16xf32, #tpu.memory_space<vmem>>, vector<16x16xf32>
    %c0_4 = arith.constant 0 : index
    %c0_5 = arith.constant 0 : index
    %5 = vector.load %arg3[%c0_4, %c0_5] : memref<16x128xf32, #tpu.memory_space<vmem>>, vector<16x128xf32>
    %cst = arith.constant dense<0.000000e+00> : vector<16x128xf32>
    %6 = tpu.matmul %4, %5, %cst {dimension_numbers = #tpu.dot_dimension_numbers<[1], [0], [0], [1], [0, 0, 1, 1], [], []>} : vector<16x16xf32>, vector<16x128xf32>, vector<16x128xf32> -> vector<16x128xf32>
    %7 = arith.addf %3, %6 : vector<16x128xf32>
    %c0_6 = arith.constant 0 : index
    %c0_7 = arith.constant 0 : index
    %8 = vector.load %arg5[%c0_6, %c0_7] : memref<16x128xf32, #tpu.memory_space<vmem>>, vector<16x128xf32>
    tpu.vector_store %arg5[%c0_6, %c0_7], %7 {strides = array<i32>} : memref<16x128xf32, #tpu.memory_space<vmem>>, vector<16x128xf32>,
    %c0_i32_8 = arith.constant 0 : i32
    %9 = arith.cmpi eq, %arg1, %c0_i32_8 : i32
    %10 = arith.extui %9 : i1 to i32
    %c0_i32_9 = arith.constant 0 : i32
    %11 = arith.cmpi ne, %10, %c0_i32_9 : i32
    scf.if %11 {
      %c0_10 = arith.constant 0 : index
      %c0_11 = arith.constant 0 : index
      %12 = vector.load %arg5[%c0_10, %c0_11] : memref<16x128xf32, #tpu.memory_space<vmem>>, vector<16x128xf32>
      %c0_12 = arith.constant 0 : index
      %c0_13 = arith.constant 0 : index
      %13 = vector.load %arg4[%c0_12, %c0_13] : memref<16x128xf32, #tpu.memory_space<vmem>>, vector<16x128xf32>
      %14 = arith.addf %12, %13 : vector<16x128xf32>
      %c0_14 = arith.constant 0 : index
      %c0_15 = arith.constant 0 : index
      %15 = vector.load %arg5[%c0_14, %c0_15] : memref<16x128xf32, #tpu.memory_space<vmem>>, vector<16x128xf32>
      tpu.vector_store %arg5[%c0_14, %c0_15], %14 {strides = array<i32>} : memref<16x128xf32, #tpu.memory_space<vmem>>, vector<16x128xf32>,
    } else {
    }
    return
  }
  func.func @transform_0(%arg0: i32, %arg1: i32) -> (i32, i32) {
    %c0_i32 = arith.constant 0 : i32
    return %arg0, %arg1 : i32, i32
  }
  func.func @transform_1(%arg0: i32, %arg1: i32) -> (i32, i32) {
    %c1_i32 = arith.constant 1 : i32
    %c0_i32 = arith.constant 0 : i32
    return %arg1, %c1_i32 : i32, i32
  }
  func.func @transform_2(%arg0: i32, %arg1: i32) -> (i32, i32) {
    %c0_i32 = arith.constant 0 : i32
    %c0_i32_0 = arith.constant 0 : i32
    return %arg0, %c0_i32 : i32, i32
  }
  func.func @transform_3(%arg0: i32, %arg1: i32) -> (i32, i32) {
    %c0_i32 = arith.constant 0 : i32
    %c0_i32_0 = arith.constant 0 : i32
    return %arg0, %c0_i32 : i32, i32
  }
}

</mosaic_0001>

<llo_original>
// kernel: new_convolution.2
$region0: #{new_convolution.2}
  #allocation0 [shape = 'u32[]', space=smem, size = 0x4, offset = 0x4, fixed_abs, tag = 'smem constant byte address 0x4 - core index']
  #allocation1 [shape = 'u32[72,128]{1,0:T(1,128)}', space=vmem, size = 0x9000, scoped, tag = 'internal scratch']
  %s0 = inlined_call_operand.vmem [shape: f32[16,32], index: 0, kind: input, shape index: {}]
  %s1 = inlined_call_operand.vmem [shape: f32[32,256], index: 1, kind: input, shape index: {}]
  %s2 = inlined_call_operand.vmem [shape: f32[1,256], index: 2, kind: input, shape index: {}]
  %s3 = inlined_call_operand.vmem [shape: f32[16,256], index: 3, kind: output, shape index: {}]
  %s4 = sld [smem:[#allocation0]]
  $region22: #{new_convolution.2} parent=0
    _
  %s6 = ssub.s32 1, %s4
  %s7 = scalar_select 0, %s6, %s4
  // Predicated region
  $region2: #{new_convolution.2} parent=0 // pred_check
    _
  $region3: #{new_convolution.2} parent=0 // pred_check_branch
    %9 = sbr.rel (0) target = $region5
  $region4: #{new_convolution.2} parent=0 // pred_region
    _
  $region5: #{new_convolution.2} parent=0 // pred_fallthru
    _
  // Predicated region
  $region6: #{new_convolution.2} parent=0 // pred_check
    _
  $region7: #{new_convolution.2} parent=0 // pred_check_branch
    %11 = sbr.rel (0) target = $region9
  $region8: #{new_convolution.2} parent=0 // pred_region
    _
  $region9: #{new_convolution.2} parent=0 // pred_fallthru
    _
  // Predicated region
  $region10: #{new_convolution.2} parent=0 // pred_check
    _
  $region11: #{new_convolution.2} parent=0 // pred_check_branch
    %13 = sbr.rel (0) target = $region13
  $region12: #{new_convolution.2} parent=0 // pred_region
    _
  $region13: #{new_convolution.2} parent=0 // pred_fallthru
    _
  %v14 = vld [vmem:[%s0] sm:$0xff]
  %v15 = vld [vmem:[%s0 + $0x8] sm:$0xff]
  %v16 = vld [vmem:[%s1] sm:$0xff]
  %v17 = vld [vmem:[%s1 + $0x8] sm:$0xff]
  %v18 = vld [vmem:[%s1 + $0x10] sm:$0xff]
  %v19 = vld [vmem:[%s1 + $0x18] sm:$0xff]
  %v20 = vld [vmem:[%s1 + $0x20] sm:$0xff]
  %v21 = vld [vmem:[%s1 + $0x28] sm:$0xff]
  %v22 = vld [vmem:[%s1 + $0x30] sm:$0xff]
  %v23 = vld [vmem:[%s1 + $0x38] sm:$0xff]
  %v24 = vld [vmem:[%s2] sm:$0x3]
  %v26 = vperm.slane %v24, 0
  %v27 = vperm.slane %v24, 1
  %vm30 = vcmask 261120
  %v32 = vsel %vm30, %v14, 0
  %v35 = vsel %vm30, %v15, 0
  %37 = vmatpush.msra.mxu0 0.0
  %38 = vmatpush.msra.mxu0 0.0
  %39 = vmatpush.msra.mxu0 0.0
  %40 = vmatpush.msra.mxu0 0.0
  %41 = vmatpush.msra.mxu0 0.0
  %42 = vmatpush.msra.mxu0 0.0
  %43 = vmatpush.msra.mxu0 0.0
  %44 = vmatpush.msra.mxu0 0.0
  %45 = vmatpush.msra.mxu0 0.0
  %46 = vmatpush.msra.mxu0 0.0
  %47 = vmatpush.msra.mxu0 0.0
  %48 = vmatpush.msra.mxu0 0.0
  %49 = vmatpush.msra.mxu0 %v22
  %50 = vmatpush.msra.mxu0 %v20
  %51 = vmatpush.msra.mxu0 %v18
  %52 = vmatpush.msra.mxu0 %v16
  %53 = vmatmul.f32.gmra.mxu0 %v32
  %v54 = vpop.f32.mrf.mxu0
  %v55 = vadd.f32 %v26, %v54
  %56 = vmatmul.f32.gmra.mxu0 %v35
  %v57 = vpop.f32.mrf.mxu0
  %v58 = vadd.f32 %v26, %v57
  %59 = vdwg.mxu0
  %60 = vmatpush.msra.mxu0 0.0
  %61 = vmatpush.msra.mxu0 0.0
  %62 = vmatpush.msra.mxu0 0.0
  %63 = vmatpush.msra.mxu0 0.0
  %64 = vmatpush.msra.mxu0 0.0
  %65 = vmatpush.msra.mxu0 0.0
  %66 = vmatpush.msra.mxu0 0.0
  %67 = vmatpush.msra.mxu0 0.0
  %68 = vmatpush.msra.mxu0 0.0
  %69 = vmatpush.msra.mxu0 0.0
  %70 = vmatpush.msra.mxu0 0.0
  %71 = vmatpush.msra.mxu0 0.0
  %72 = vmatpush.msra.mxu0 %v23
  %73 = vmatpush.msra.mxu0 %v21
  %74 = vmatpush.msra.mxu0 %v19
  %75 = vmatpush.msra.mxu0 %v17
  %76 = vmatmul.f32.gmra.mxu0 %v32
  %v77 = vpop.f32.mrf.mxu0
  %v78 = vadd.f32 %v27, %v77
  %79 = vmatmul.f32.gmra.mxu0 %v35
  %v80 = vpop.f32.mrf.mxu0
  %v81 = vadd.f32 %v27, %v80
  %82 = vdwg.mxu0
  %83 = vst [vmem:[%s3] sm:$0xff] %v55
  %84 = vst [vmem:[%s3 + $0x8] sm:$0xff] %v78
  %85 = vst [vmem:[%s3 + $0x10] sm:$0xff] %v58
  %86 = vst [vmem:[%s3 + $0x18] sm:$0xff] %v81
  // Predicated region
  $region14: #{new_convolution.2} parent=0 // pred_check
    _
  $region15: #{new_convolution.2} parent=0 // pred_check_branch
    %88 = sbr.rel (0) target = $region17
  $region16: #{new_convolution.2} parent=0 // pred_region
    _
  $region17: #{new_convolution.2} parent=0 // pred_fallthru
    _
  // Predicated region
  $region18: #{new_convolution.2} parent=0 // pred_check
    _
  $region19: #{new_convolution.2} parent=0 // pred_check_branch
    %90 = sbr.rel (0) target = $region21
  $region20: #{new_convolution.2} parent=0 // pred_region
    _
  $region21: #{new_convolution.2} parent=0 // pred_fallthru
    _

// kernel: new_convolution.3
$region0: #{new_convolution.3}
  #allocation0 [shape = 'u32[]', space=smem, size = 0x4, offset = 0x4, fixed_abs, tag = 'smem constant byte address 0x4 - core index']
  #allocation1 [shape = 'u32[72,128]{1,0:T(1,128)}', space=vmem, size = 0x9000, scoped, tag = 'internal scratch']
  %s0 = inlined_call_operand.vmem [shape: f32[16,16], index: 0, kind: input, shape index: {}]
  %s1 = inlined_call_operand.vmem [shape: f32[16,256], index: 1, kind: input, shape index: {}, may-alias: {1,2}]
  %s2 = inlined_call_operand.vmem [shape: f32[16,256], index: 2, kind: input, shape index: {}, may-alias: {1,2}]
  %s3 = inlined_call_operand.hbm [shape: f32[16,128], index: 3, kind: output, shape index: {}]
  %s4 = sld [smem:[#allocation0]]
  $region106: #{new_convolution.3} parent=0
    _
  %s6 = ssub.s32 1, %s4
  %s7 = scalar_select 0, %s6, %s4
  $region1: #{new_convolution.3} parent=0
    #allocation2 [shape = 'u8[8192]{0}', space=vmem, size = 0x2000, scoped, tag = 'input window, operand 1, single buffered']
    #allocation3 [shape = 'u8[8192]{0}', space=vmem, size = 0x2000, scoped, tag = 'input window, operand 2, single buffered']
    #allocation4 [shape = 'u8[8192]{0}', space=vmem, size = 0x2000, scoped, tag = 'output window, operand 0, single buffered']
    #allocation5 [shape = 's32[1]{0}', space=sflag, size = 0x4, scoped, tag = 'scoped memory for new_convolution.3']
    %8 = vsyncpa [#allocation5], 0
    // Predicated region
    $region2: #{new_convolution.3} parent=1 // pred_check
      _
    $region3: #{new_convolution.3} parent=1 // pred_check_branch
      %10 = sbr.rel (0) target = $region5
    $region4: #{new_convolution.3} parent=1 // pred_region
      _
    $region5: #{new_convolution.3} parent=1 // pred_fallthru
      _
    // Predicated region
    $region6: #{new_convolution.3} parent=1 // pred_check
      _
    $region7: #{new_convolution.3} parent=1 // pred_check_branch
      %12 = sbr.rel (0) target = $region9
    $region8: #{new_convolution.3} parent=1 // pred_region
      %s13 = scalar_lea.vmem %s1, 8
      // Predicated region
      $region10: #{new_convolution.3} parent=8 // pred_check
        _
      $region11: #{new_convolution.3} parent=8 // pred_check_branch
        %15 = sbr.rel (0) target = $region13
      $region12: #{new_convolution.3} parent=8 // pred_region
        // Predicated region
        $region14: #{new_convolution.3} parent=12 // pred_check
          _
        $region15: #{new_convolution.3} parent=12 // pred_check_branch
          %17 = sbr.rel (0) target = $region17
        $region16: #{new_convolution.3} parent=12 // pred_region
          // Predicated region
          $region29: #{new_convolution.3} parent=16 // pred_check
            _
          $region30: #{new_convolution.3} parent=16 // pred_check_branch
            %35 = sbr.rel (0) target = $region32
          $region31: #{new_convolution.3} parent=16 // pred_region
            loop: start=0, step=1, limit=1
            $region33: #{new_convolution.3} parent=31 // loop_pre_header
              _
            $region34: #{new_convolution.3} parent=31 // loop_header
              %s37 = sphi 0, %s41
              %p38 = scmp.ge.s32.totalorder %s37, 1
              %s42 = sphi %s13, %s13
              %s43 = sphi [#allocation2], [#allocation2]
            $region35: #{new_convolution.3} parent=31 // loop_header_branch
              %40 = sbr.rel (%p38) target = $region39
            $region36: #{new_convolution.3} parent=31 // loop_body
              %v44 = vld [vmem:[%s42] sm:$0xff]
              %45 = vst [vmem:[%s43] sm:$0xff] %v44
              %v46 = vld [vmem:[%s42 + $0x10] sm:$0xff]
              %47 = vst [vmem:[%s43 + $0x8] sm:$0xff] %v46
            $region37: #{new_convolution.3} parent=31 // loop_footer
              %s41 = sadd.s32 1, %s37
            $region38: #{new_convolution.3} parent=31 // loop_footer_branch
              %36 = sbr.rel target = $region34
            $region39: #{new_convolution.3} parent=31 // loop_exit
              _
          $region32: #{new_convolution.3} parent=16 // pred_fallthru
            _
          // Predicated region
          $region40: #{new_convolution.3} parent=16 // pred_check
            _
          $region41: #{new_convolution.3} parent=16 // pred_check_branch
            %49 = sbr.rel target = $region43
          $region42: #{new_convolution.3} parent=16 // pred_region
            _
          $region43: #{new_convolution.3} parent=16 // pred_fallthru
            _
        $region17: #{new_convolution.3} parent=12 // pred_fallthru
          _
        // Predicated region
        $region18: #{new_convolution.3} parent=12 // pred_check
          _
        $region19: #{new_convolution.3} parent=12 // pred_check_branch
          %19 = sbr.rel target = $region21
        $region20: #{new_convolution.3} parent=12 // pred_region
          %s21 = ssub.s32 256, 1
          loop: start=0, step=1, limit=1
          $region22: #{new_convolution.3} parent=20 // loop_pre_header
            _
          $region23: #{new_convolution.3} parent=20 // loop_header
            %s23 = sphi 0, %s27
            %p24 = scmp.ge.s32.totalorder %s23, 1
            %s28 = sphi %s13, %s13
            %s29 = sphi [#allocation2], [#allocation2]
          $region24: #{new_convolution.3} parent=20 // loop_header_branch
            %26 = sbr.rel (%p24) target = $region28
          $region25: #{new_convolution.3} parent=20 // loop_body
            %v30 = vld [vmem:[%s28] sm:%s21]
            %31 = vst [vmem:[%s29] sm:%s21] %v30
            %v32 = vld [vmem:[%s28 + $0x10] sm:%s21]
            %33 = vst [vmem:[%s29 + $0x8] sm:%s21] %v32
          $region26: #{new_convolution.3} parent=20 // loop_footer
            %s27 = sadd.s32 1, %s23
          $region27: #{new_convolution.3} parent=20 // loop_footer_branch
            %22 = sbr.rel target = $region23
          $region28: #{new_convolution.3} parent=20 // loop_exit
            _
        $region21: #{new_convolution.3} parent=12 // pred_fallthru
          _
      $region13: #{new_convolution.3} parent=8 // pred_fallthru
        _
      %50 = vnop
    $region9: #{new_convolution.3} parent=1 // pred_fallthru
      _
    // Predicated region
    $region44: #{new_convolution.3} parent=1 // pred_check
      _
    $region45: #{new_convolution.3} parent=1 // pred_check_branch
      %52 = sbr.rel (0) target = $region47
    $region46: #{new_convolution.3} parent=1 // pred_region
      // Predicated region
      $region48: #{new_convolution.3} parent=46 // pred_check
        _
      $region49: #{new_convolution.3} parent=46 // pred_check_branch
        %54 = sbr.rel (0) target = $region51
      $region50: #{new_convolution.3} parent=46 // pred_region
        // Predicated region
        $region52: #{new_convolution.3} parent=50 // pred_check
          _
        $region53: #{new_convolution.3} parent=50 // pred_check_branch
          %56 = sbr.rel (0) target = $region55
        $region54: #{new_convolution.3} parent=50 // pred_region
          // Predicated region
          $region67: #{new_convolution.3} parent=54 // pred_check
            _
          $region68: #{new_convolution.3} parent=54 // pred_check_branch
            %74 = sbr.rel (0) target = $region70
          $region69: #{new_convolution.3} parent=54 // pred_region
            loop: start=0, step=1, limit=1
            $region71: #{new_convolution.3} parent=69 // loop_pre_header
              _
            $region72: #{new_convolution.3} parent=69 // loop_header
              %s76 = sphi 0, %s80
              %p77 = scmp.ge.s32.totalorder %s76, 1
              %s81 = sphi %s2, %s2
              %s82 = sphi [#allocation3], [#allocation3]
            $region73: #{new_convolution.3} parent=69 // loop_header_branch
              %79 = sbr.rel (%p77) target = $region77
            $region74: #{new_convolution.3} parent=69 // loop_body
              %v83 = vld [vmem:[%s81] sm:$0xff]
              %84 = vst [vmem:[%s82] sm:$0xff] %v83
              %v85 = vld [vmem:[%s81 + $0x10] sm:$0xff]
              %86 = vst [vmem:[%s82 + $0x8] sm:$0xff] %v85
            $region75: #{new_convolution.3} parent=69 // loop_footer
              %s80 = sadd.s32 1, %s76
            $region76: #{new_convolution.3} parent=69 // loop_footer_branch
              %75 = sbr.rel target = $region72
            $region77: #{new_convolution.3} parent=69 // loop_exit
              _
          $region70: #{new_convolution.3} parent=54 // pred_fallthru
            _
          // Predicated region
          $region78: #{new_convolution.3} parent=54 // pred_check
            _
          $region79: #{new_convolution.3} parent=54 // pred_check_branch
            %88 = sbr.rel target = $region81
          $region80: #{new_convolution.3} parent=54 // pred_region
            _
          $region81: #{new_convolution.3} parent=54 // pred_fallthru
            _
        $region55: #{new_convolution.3} parent=50 // pred_fallthru
          _
        // Predicated region
        $region56: #{new_convolution.3} parent=50 // pred_check
          _
        $region57: #{new_convolution.3} parent=50 // pred_check_branch
          %58 = sbr.rel target = $region59
        $region58: #{new_convolution.3} parent=50 // pred_region
          %s60 = ssub.s32 256, 1
          loop: start=0, step=1, limit=1
          $region60: #{new_convolution.3} parent=58 // loop_pre_header
            _
          $region61: #{new_convolution.3} parent=58 // loop_header
            %s62 = sphi 0, %s66
            %p63 = scmp.ge.s32.totalorder %s62, 1
            %s67 = sphi %s2, %s2
            %s68 = sphi [#allocation3], [#allocation3]
          $region62: #{new_convolution.3} parent=58 // loop_header_branch
            %65 = sbr.rel (%p63) target = $region66
          $region63: #{new_convolution.3} parent=58 // loop_body
            %v69 = vld [vmem:[%s67] sm:%s60]
            %70 = vst [vmem:[%s68] sm:%s60] %v69
            %v71 = vld [vmem:[%s67 + $0x10] sm:%s60]
            %72 = vst [vmem:[%s68 + $0x8] sm:%s60] %v71
          $region64: #{new_convolution.3} parent=58 // loop_footer
            %s66 = sadd.s32 1, %s62
          $region65: #{new_convolution.3} parent=58 // loop_footer_branch
            %61 = sbr.rel target = $region61
          $region66: #{new_convolution.3} parent=58 // loop_exit
            _
        $region59: #{new_convolution.3} parent=50 // pred_fallthru
          _
      $region51: #{new_convolution.3} parent=46 // pred_fallthru
        _
      %89 = vnop
    $region47: #{new_convolution.3} parent=1 // pred_fallthru
      _
    // Predicated region
    $region82: #{new_convolution.3} parent=1 // pred_check
      _
    $region83: #{new_convolution.3} parent=1 // pred_check_branch
      %91 = sbr.rel (0) target = $region85
    $region84: #{new_convolution.3} parent=1 // pred_region
      _
    $region85: #{new_convolution.3} parent=1 // pred_fallthru
      _
    // Predicated region
    $region86: #{new_convolution.3} parent=1 // pred_check
      _
    $region87: #{new_convolution.3} parent=1 // pred_check_branch
      %93 = sbr.rel (0) target = $region89
    $region88: #{new_convolution.3} parent=1 // pred_region
      _
    $region89: #{new_convolution.3} parent=1 // pred_fallthru
      _
    %p94 = scmp.eq.s32.totalorder 0, 0
    // Predicated region
    $region90: #{new_convolution.3} parent=1 // pred_check
      %p95 = pneg %p94
    $region91: #{new_convolution.3} parent=1 // pred_check_branch
      %97 = sbr.rel (%p95) target = $region93
    $region92: #{new_convolution.3} parent=1 // pred_region
      %98 = vst [vmem:[#allocation4] sm:$0xff] 0.0
      %99 = vst [vmem:[#allocation4 + $0x8] sm:$0xff] 0.0
    $region93: #{new_convolution.3} parent=1 // pred_fallthru
      _
    %v100 = vld [vmem:[#allocation4] sm:$0xff]
    %v101 = vld [vmem:[#allocation4 + $0x8] sm:$0xff]
    %v102 = vld [vmem:[%s0] sm:$0xff]
    %v103 = vld [vmem:[%s0 + $0x8] sm:$0xff]
    %v104 = vld [vmem:[#allocation2] sm:$0xff]
    %v105 = vld [vmem:[#allocation2 + $0x8] sm:$0xff]
    %vm106 = vcmask 130048
    %v108 = vsel %vm106, %v102, 0
    %v111 = vsel %vm106, %v103, 0
    %113 = vmatpush.msra.mxu0 0.0
    %114 = vmatpush.msra.mxu0 0.0
    %115 = vmatpush.msra.mxu0 0.0
    %116 = vmatpush.msra.mxu0 0.0
    %117 = vmatpush.msra.mxu0 0.0
    %118 = vmatpush.msra.mxu0 0.0
    %119 = vmatpush.msra.mxu0 0.0
    %120 = vmatpush.msra.mxu0 0.0
    %121 = vmatpush.msra.mxu0 0.0
    %122 = vmatpush.msra.mxu0 0.0
    %123 = vmatpush.msra.mxu0 0.0
    %124 = vmatpush.msra.mxu0 0.0
    %125 = vmatpush.msra.mxu0 0.0
    %126 = vmatpush.msra.mxu0 0.0
    %127 = vmatpush.msra.mxu0 %v105
    %128 = vmatpush.msra.mxu0 %v104
    %129 = vmatmul.f32.gmra.mxu0 %v108
    %v130 = vpop.f32.mrf.mxu0
    %v131 = vadd.f32 0.0, %v130
    %132 = vmatmul.f32.gmra.mxu0 %v111
    %v133 = vpop.f32.mrf.mxu0
    %v134 = vadd.f32 0.0, %v133
    %135 = vdwg.mxu0
    %v136 = vadd.f32 %v100, %v131
    %v137 = vadd.f32 %v101, %v134
    %138 = vst [vmem:[#allocation4] sm:$0xff] %v136
    %139 = vst [vmem:[#allocation4 + $0x8] sm:$0xff] %v137
    // Predicated region
    $region94: #{new_convolution.3} parent=1 // pred_check
      %p140 = pneg %p94
    $region95: #{new_convolution.3} parent=1 // pred_check_branch
      %142 = sbr.rel (%p140) target = $region97
    $region96: #{new_convolution.3} parent=1 // pred_region
      %v143 = vld [vmem:[#allocation4] sm:$0xff]
      %v144 = vld [vmem:[#allocation4 + $0x8] sm:$0xff]
      %v145 = vld [vmem:[#allocation3] sm:$0xff]
      %v146 = vld [vmem:[#allocation3 + $0x8] sm:$0xff]
      %v147 = vadd.f32 %v143, %v145
      %v148 = vadd.f32 %v144, %v146
      %149 = vst [vmem:[#allocation4] sm:$0xff] %v147
      %150 = vst [vmem:[#allocation4 + $0x8] sm:$0xff] %v148
    $region97: #{new_convolution.3} parent=1 // pred_fallthru
      _
    // Predicated region
    $region98: #{new_convolution.3} parent=1 // pred_check
      _
    $region99: #{new_convolution.3} parent=1 // pred_check_branch
      %152 = sbr.rel (0) target = $region101
    $region100: #{new_convolution.3} parent=1 // pred_region
      %154 = vsyncadd [#allocation5], 0
      %s155 = sshll.u32 [#allocation4], 4
      %s156 = int_to_ptr.vmem [resolvable:$true] %s155
      %s157 = sshll.u32 %s3, 4
      %s158 = int_to_ptr.hbm [resolvable:$true] %s157
      %163 = dma.vmem_to_hbm [thread:$0]  %s156, 256, %s158, [#allocation5], 128, 128, 8
    $region101: #{new_convolution.3} parent=1 // pred_fallthru
      _
    // Predicated region
    $region102: #{new_convolution.3} parent=1 // pred_check
      _
    $region103: #{new_convolution.3} parent=1 // pred_check_branch
      %165 = sbr.rel (0) target = $region105
    $region104: #{new_convolution.3} parent=1 // pred_region
      %167 = dma.done [#allocation5], 256
    $region105: #{new_convolution.3} parent=1 // pred_fallthru
      _
    %168 = vsyncpa [#allocation5], 1

</llo_original>
